<compile_context>
chip_gen: v6e
topology: v6e:2x2x1
jax: 0.10.0
libtpu: 0.0.40
codegen_flags: <defaults>
</compile_context>

<pallas_src>
import functools

import jax
import jax.numpy as jnp
from jax.experimental import pallas as pl
from jax.experimental.pallas import tpu as pltpu


# --------------------------------------------------------------------------------------
# Kernel
# --------------------------------------------------------------------------------------
def _attention_gate_kernel(g_ref, x_ref, wgT_ref, wxT_ref, consts_ref, bpsi_ref, out_ref):
    """One (batch, voxel-tile) step of the attention gate, channels-on-sublanes layout.

    g_ref     : [F_g, TS]     gating-signal voxels (channels x voxels)
    x_ref     : [F_l, TS]     skip-connection voxels
    wgT_ref   : [F_int, F_g]  folded (conv+BN) weight for W_g branch, transposed
    wxT_ref   : [F_int, F_l]  folded (conv+BN) weight for W_x branch, transposed
    consts_ref: [F_int, 2]    col 0 = folded bias (bg + bx), col 1 = folded psi conv weight
    bpsi_ref  : [1]  (SMEM)   folded psi conv bias (scalar)
    out_ref   : [F_l, TS]     x * sigmoid(psi)
    """
    g = g_ref[...].astype(jnp.float32)          # [F_g, TS]
    x = x_ref[...].astype(jnp.float32)          # [F_l, TS]

    bias = consts_ref[:, 0:1]                   # [F_int, 1]   (bg + bx, BN-folded)
    wpsi = consts_ref[:, 1:2]                   # [F_int, 1]   psi conv weight (BN-folded)

    # Fused branch: relu(Wg^T g + Wx^T x + (bg + bx))  -> [F_int, TS]
    a = jnp.dot(wgT_ref[...], g, preferred_element_type=jnp.float32)
    a = a + jnp.dot(wxT_ref[...], x, preferred_element_type=jnp.float32)
    a = jnp.maximum(a + bias, 0.0)

    # psi conv (F_int -> 1) as a sublane reduction (avoids an N=1 MXU matmul): [1, TS]
    psi = jnp.sum(a * wpsi, axis=0, keepdims=True) + bpsi_ref[0]

    # sigmoid via the EUP tanh path (no full-precision VALU divide):
    # sigmoid(z) = 0.5 * (1 + tanh(z / 2))
    psi = 0.5 * (jnp.tanh(0.5 * psi) + 1.0)

    # x * psi, psi broadcast over the F_l sublanes; lane-dense store.
    out_ref[...] = (x * psi).astype(out_ref.dtype)


# --------------------------------------------------------------------------------------
# BN folding / tiling selection (host side, all static)
# --------------------------------------------------------------------------------------
def _fold_bn(conv_w, conv_b, gamma, beta, mean, var, eps=1e-5):
    """Fold eval-mode BatchNorm into a 1x1x1 conv (channel-matmul) weight/bias.

    conv_w: [C_in, C_out], conv_b: [C_out]
    """
    scale = gamma / jnp.sqrt(var + eps)                 # [C_out]
    w = conv_w * scale[None, :]                         # [C_in, C_out]
    b = (conv_b - mean) * scale + beta                  # [C_out]
    return w.astype(jnp.float32), b.astype(jnp.float32)


def _cdiv(a, b):
    return -(-a // b)


def _pick_tiling(N, S, F_g, F_l, F_int, io_bytes):
    """Choose (tile_s, vmem_limit_bytes) from the per-generation VMEM capacity."""
    try:
        vmem_cap = int(pltpu.get_tpu_info().vmem_capacity_bytes)
    except Exception:  # pragma: no cover - conservative fallback (e.g. interpret mode)
        vmem_cap = 64 * 1024 * 1024

    if vmem_cap <= 64 * 1024 * 1024:
        # v7x-class: 64 MiB physical per TC -> keep the scoped limit <= ~48 MiB.
        vmem_limit = min(48 * 1024 * 1024, int(vmem_cap * 0.75))
    else:
        # v5e / v6e-class: 128 MiB physical -> use ~100 MiB.
        vmem_limit = min(100 * 1024 * 1024, int(vmem_cap * 0.80))

    # Per-voxel VMEM bytes:
    #   double-buffered I/O tiles: 2 * (F_g + F_l inputs + F_l output) * io_bytes
    #   f32 temporaries: upcast g/x, intermediate a[F_int, TS], x*psi product, psi row.
    per_voxel = 2 * (F_g + 2 * F_l) * io_bytes + (F_g + 2 * F_l + F_int + 4) * 4
    budget = int(vmem_limit * 0.85)
    max_tile = max(((budget // per_voxel) // 128) * 128, 128)

    tile_s = S if S <= max_tile else max_tile

    # Guarantee >=2 grid blocks so v7x's two TensorCores both get work (neutral elsewhere).
    if N * _cdiv(S, tile_s) < 2 and S >= 256:
        tile_s = _cdiv(_cdiv(S, 2), 128) * 128

    return tile_s, vmem_limit


# --------------------------------------------------------------------------------------
# Forward pass
# --------------------------------------------------------------------------------------
@functools.partial(jax.jit, static_argnames=("tile_s", "vmem_limit", "io_dtype"))
def _attention3d_pallas(g, x, params, tile_s, vmem_limit, io_dtype):
    N, F_g, D, H, W = g.shape
    _, F_l, _, _, _ = x.shape
    S = D * H * W

    wg, bg = _fold_bn(params["wg"], params["bg"], params["gn_g"], params["bt_g"],
                      params["mu_g"], params["vr_g"])
    wx, bx = _fold_bn(params["wx"], params["bx"], params["gn_x"], params["bt_x"],
                      params["mu_x"], params["vr_x"])
    wp, bp = _fold_bn(params["wp"], params["bp"], params["gn_p"], params["bt_p"],
                      params["mu_p"], params["vr_p"])
    F_int = wg.shape[1]

    # NCDHW is already [N, C, S]: pure reshape, no HBM transpose passes.
    g3 = g.reshape(N, F_g, S)
    x3 = x.reshape(N, F_l, S)
    if io_dtype is not None:
        g3 = g3.astype(io_dtype)
        x3 = x3.astype(io_dtype)
    out_dtype = x.dtype if io_dtype is None else io_dtype

    # Tiny invariant operands, prepared once outside the kernel.
    wgT = wg.T                                            # [F_int, F_g]
    wxT = wx.T                                            # [F_int, F_l]
    consts = jnp.concatenate([(bg + bx)[:, None],         # fused branch bias
                              wp.reshape(F_int, 1)],      # psi conv weight
                             axis=1)                      # [F_int, 2]
    bpsi = bp.reshape((1,))                               # scalar -> SMEM

    grid = (N, _cdiv(S, tile_s))

    M = N * S
    io_bytes = jnp.dtype(g3.dtype).itemsize
    cost = pl.CostEstimate(
        flops=2 * M * F_int * (F_g + F_l + 1) + 4 * M * F_l,
        transcendentals=M,
        bytes_accessed=io_bytes * M * (F_g + F_l)
        + jnp.dtype(out_dtype).itemsize * M * F_l
        + 4 * (F_int * (F_g + F_l + 2) + 1),
    )

    out3 = pl.pallas_call(
        _attention_gate_kernel,
        out_shape=jax.ShapeDtypeStruct((N, F_l, S), out_dtype),
        grid_spec=pltpu.PrefetchScalarGridSpec(
            num_scalar_prefetch=0,
            grid=grid,
            in_specs=[
                pl.BlockSpec((None, F_g, tile_s), lambda n, i: (n, 0, i)),   # g tile
                pl.BlockSpec((None, F_l, tile_s), lambda n, i: (n, 0, i)),   # x tile
                pl.BlockSpec((F_int, F_g), lambda n, i: (0, 0)),             # wgT (whole)
                pl.BlockSpec((F_int, F_l), lambda n, i: (0, 0)),             # wxT (whole)
                pl.BlockSpec((F_int, 2), lambda n, i: (0, 0)),               # bias | wpsi
                pl.BlockSpec(memory_space=pltpu.MemorySpace.SMEM),           # bpsi scalar
            ],
            out_specs=pl.BlockSpec((None, F_l, tile_s), lambda n, i: (n, 0, i)),
        ),
        compiler_params=pltpu.CompilerParams(
            dimension_semantics=("parallel", "parallel"),   # lets v7x use both TensorCores
            vmem_limit_bytes=vmem_limit,                    # per-generation budget
        ),
        cost_estimate=cost,
    )(g3, x3, wgT, wxT, consts, bpsi)

    # [N, F_l, S] -> NCDHW (pure reshape, no transpose).
    return out3.reshape(N, F_l, D, H, W)


def attention3d_forward(g, x, params, io_dtype=None, _tile_s_override=None):
    """g: [N, F_g, D, H, W], x: [N, F_l, D, H, W]  (PyTorch NCDHW). Returns x * psi.

    io_dtype: optional narrower I/O dtype (e.g. jnp.bfloat16) for the bandwidth-bound
    voxel streams; compute stays f32 inside the kernel. Default None keeps x.dtype.
    """
    N, F_g, D, H, W = g.shape
    _, F_l, _, _, _ = x.shape
    S = D * H * W
    F_int = params["wg"].shape[1]
    io_bytes = jnp.dtype(io_dtype if io_dtype is not None else g.dtype).itemsize

    tile_s, vmem_limit = _pick_tiling(N, S, F_g, F_l, F_int, io_bytes)
    if _tile_s_override is not None:          # test hook: force small tiles / tail tiles
        tile_s = _tile_s_override
    return _attention3d_pallas(g, x, params, tile_s, vmem_limit, io_dtype)


# --------------------------------------------------------------------------------------
# Pure-JAX reference + test harness
# --------------------------------------------------------------------------------------
def _reference_forward(g, x, params):
    """Pure-JAX reference (same eval-mode BN folding), for correctness check."""
    wg, bg = _fold_bn(params["wg"], params["bg"], params["gn_g"], params["bt_g"],
                      params["mu_g"], params["vr_g"])
    wx, bx = _fold_bn(params["wx"], params["bx"], params["gn_x"], params["bt_x"],
                      params["mu_x"], params["vr_x"])
    wp, bp = _fold_bn(params["wp"], params["bp"], params["gn_p"], params["bt_p"],
                      params["mu_p"], params["vr_p"])
    gcl = jnp.transpose(g, (0, 2, 3, 4, 1)).astype(jnp.float32)
    xcl = jnp.transpose(x, (0, 2, 3, 4, 1)).astype(jnp.float32)
    g1 = jnp.einsum("ndhwc,co->ndhwo", gcl, wg) + bg
    x1 = jnp.einsum("ndhwc,co->ndhwo", xcl, wx) + bx
    a = jnp.maximum(g1 + x1, 0.0)
    psi = jnp.einsum("ndhwc,co->ndhwo", a, wp) + bp
    psi = jax.nn.sigmoid(psi)
    out = xcl * psi
    return jnp.transpose(out, (0, 4, 1, 2, 3)).astype(x.dtype)


def _init_params(key, F_g, F_l, F_int):
    ks = jax.random.split(key, 6)
    p = {
        # 1x1x1 conv weights stored as [C_in, C_out]
        "wg": jax.random.normal(ks[0], (F_g, F_int), jnp.float32) * 0.2,
        "bg": jax.random.normal(ks[1], (F_int,), jnp.float32) * 0.1,
        "wx": jax.random.normal(ks[2], (F_l, F_int), jnp.float32) * 0.2,
        "bx": jax.random.normal(ks[3], (F_int,), jnp.float32) * 0.1,
        "wp": jax.random.normal(ks[4], (F_int, 1), jnp.float32) * 0.2,
        "bp": jax.random.normal(ks[5], (1,), jnp.float32) * 0.1,
        # BatchNorm (eval-mode) parameters / running stats, deterministic non-trivial values
        "gn_g": jnp.linspace(0.8, 1.2, F_int, dtype=jnp.float32),
        "bt_g": jnp.linspace(-0.1, 0.1, F_int, dtype=jnp.float32),
        "mu_g": jnp.linspace(-0.05, 0.05, F_int, dtype=jnp.float32),
        "vr_g": jnp.linspace(0.9, 1.1, F_int, dtype=jnp.float32),
        "gn_x": jnp.linspace(1.1, 0.9, F_int, dtype=jnp.float32),
        "bt_x": jnp.linspace(0.1, -0.1, F_int, dtype=jnp.float32),
        "mu_x": jnp.linspace(0.05, -0.05, F_int, dtype=jnp.float32),
        "vr_x": jnp.linspace(1.1, 0.9, F_int, dtype=jnp.float32),
        "gn_p": jnp.array([1.05], jnp.float32),
        "bt_p": jnp.array([0.02], jnp.float32),
        "mu_p": jnp.array([0.01], jnp.float32),
        "vr_p": jnp.array([1.03], jnp.float32),
    }
    return p


if __name__ == "__main__":
    key = jax.random.PRNGKey(0)
    kg, kx, kp = jax.random.split(key, 3)

    # Test 1: small shapes, single VMEM-sized tile per batch element.
    # batch=2, F_g=8, F_l=4, F_int=16, spatial D,H,W = 4,8,8  (S = 256)
    N, F_g, F_l, F_int = 2, 8, 4, 16
    D, H, W = 4, 8, 8
    g = jax.random.normal(kg, (N, F_g, D, H, W), jnp.float32)
    x = jax.random.normal(kx, (N, F_l, D, H, W), jnp.float32)
    params = _init_params(kp, F_g, F_l, F_int)

    out = attention3d_forward(g, x, params)
    out = jax.block_until_ready(out)
    ref = _reference_forward(g, x, params)
    assert out.shape == (N, F_l, D, H, W)
    assert jnp.allclose(out, ref, atol=1e-4, rtol=1e-4), "mismatch vs JAX reference (test 1)"

    # Test 2: force a small 128-lane tile so the multi-tile path and the partial tail tile
    # (S = 3*10*10 = 300, not a multiple of 128) are exercised.
    D2, H2, W2 = 3, 10, 10
    g2 = jax.random.normal(jax.random.fold_in(kg, 1), (N, F_g, D2, H2, W2), jnp.float32)
    x2 = jax.random.normal(jax.random.fold_in(kx, 1), (N, F_l, D2, H2, W2), jnp.float32)
    out2 = attention3d_forward(g2, x2, params, _tile_s_override=128)
    out2 = jax.block_until_ready(out2)
    ref2 = _reference_forward(g2, x2, params)
    assert out2.shape == (N, F_l, D2, H2, W2)
    assert jnp.allclose(out2, ref2, atol=1e-4, rtol=1e-4), "mismatch vs JAX reference (test 2)"

    print("KERNEL_OK")
</pallas_src>

<mosaic_0001>
module attributes {stable_mosaic.version = 11 : i64} {
  func.func @_attention_gate_kernel(%arg0: i32, %arg1: i32, %arg2: memref<1x8x256xf32, #tpu.memory_space<vmem>>, %arg3: memref<1x4x256xf32, #tpu.memory_space<vmem>>, %arg4: memref<16x8xf32, #tpu.memory_space<vmem>>, %arg5: memref<16x4xf32, #tpu.memory_space<vmem>>, %arg6: memref<16x2xf32, #tpu.memory_space<vmem>>, %arg7: memref<1xf32, #tpu.memory_space<smem>>, %arg8: memref<1x4x256xf32, #tpu.memory_space<vmem>>) attributes {dimension_semantics = [#tpu.dimension_semantics<parallel>, #tpu.dimension_semantics<parallel>], iteration_bounds = array<i64: 2, 1>, scalar_prefetch = 0 : i64, scratch_operands = 0 : i64, tpu.core_type = #tpu.core_type<tc>, window_params = [{transform_indices = @transform_0, window_bounds = array<i64: 1, 8, 256>}, {transform_indices = @transform_1, window_bounds = array<i64: 1, 4, 256>}, {pipeline_mode = #tpu.pipeline_mode<synchronous>, transform_indices = @transform_2, window_bounds = array<i64: 16, 8>}, {pipeline_mode = #tpu.pipeline_mode<synchronous>, transform_indices = @transform_3, window_bounds = array<i64: 16, 4>}, {pipeline_mode = #tpu.pipeline_mode<synchronous>, transform_indices = @transform_4, window_bounds = array<i64: 16, 2>}, {transform_indices = @transform_5, window_bounds = array<i64: 1>}, {transform_indices = @transform_6, window_bounds = array<i64: 1, 4, 256>}]} {
    %c0 = arith.constant 0 : index
    %c0_0 = arith.constant 0 : index
    %c0_1 = arith.constant 0 : index
    %0 = vector.load %arg2[%c0, %c0_0, %c0_1] : memref<1x8x256xf32, #tpu.memory_space<vmem>>, vector<1x8x256xf32>
    %1 = vector.shape_cast %0 : vector<1x8x256xf32> to vector<8x256xf32>
    %c0_2 = arith.constant 0 : index
    %c0_3 = arith.constant 0 : index
    %c0_4 = arith.constant 0 : index
    %2 = vector.load %arg3[%c0_2, %c0_3, %c0_4] : memref<1x4x256xf32, #tpu.memory_space<vmem>>, vector<1x4x256xf32>
    %3 = vector.shape_cast %2 : vector<1x4x256xf32> to vector<4x256xf32>
    %c0_5 = arith.constant 0 : index
    %c0_6 = arith.constant 0 : index
    %4 = vector.load %arg6[%c0_5, %c0_6] : memref<16x2xf32, #tpu.memory_space<vmem>>, vector<16x1xf32>
    %c0_7 = arith.constant 0 : index
    %c1 = arith.constant 1 : index
    %5 = vector.load %arg6[%c0_7, %c1] : memref<16x2xf32, #tpu.memory_space<vmem>>, vector<16x1xf32>
    %c0_8 = arith.constant 0 : index
    %c0_9 = arith.constant 0 : index
    %6 = vector.load %arg4[%c0_8, %c0_9] : memref<16x8xf32, #tpu.memory_space<vmem>>, vector<16x8xf32>
    %cst = arith.constant dense<0.000000e+00> : vector<16x256xf32>
    %7 = tpu.matmul %6, %1, %cst {dimension_numbers = #tpu.dot_dimension_numbers<[1], [0], [0], [1], [0, 0, 1, 1], [], []>} : vector<16x8xf32>, vector<8x256xf32>, vector<16x256xf32> -> vector<16x256xf32>
    %c0_10 = arith.constant 0 : index
    %c0_11 = arith.constant 0 : index
    %8 = vector.load %arg5[%c0_10, %c0_11] : memref<16x4xf32, #tpu.memory_space<vmem>>, vector<16x4xf32>
    %cst_12 = arith.constant dense<0.000000e+00> : vector<16x256xf32>
    %9 = tpu.matmul %8, %3, %cst_12 {dimension_numbers = #tpu.dot_dimension_numbers<[1], [0], [0], [1], [0, 0, 1, 1], [], []>} : vector<16x4xf32>, vector<4x256xf32>, vector<16x256xf32> -> vector<16x256xf32>
    %10 = arith.addf %7, %9 : vector<16x256xf32>
    %11 = vector.broadcast %4 : vector<16x1xf32> to vector<16x256xf32>
    %12 = arith.addf %10, %11 : vector<16x256xf32>
    %cst_13 = arith.constant 0.000000e+00 : f32
    %13 = vector.broadcast %cst_13 : f32 to vector<16x256xf32>
    %14 = arith.maximumf %12, %13 : vector<16x256xf32>
    %15 = vector.broadcast %5 : vector<16x1xf32> to vector<16x256xf32>
    %16 = arith.mulf %14, %15 : vector<16x256xf32>
    %cst_14 = arith.constant dense<0.000000e+00> : vector<256xf32>
    %17 = vector.multi_reduction <add>, %16, %cst_14 [0] : vector<16x256xf32> to vector<256xf32>
    %18 = vector.shape_cast %17 : vector<256xf32> to vector<1x256xf32>
    %c0_15 = arith.constant 0 : index
    %19 = memref.load %arg7[%c0_15] : memref<1xf32, #tpu.memory_space<smem>>
    %20 = vector.broadcast %19 : f32 to vector<1x256xf32>
    %21 = arith.addf %18, %20 : vector<1x256xf32>
    %cst_16 = arith.constant 5.000000e-01 : f32
    %22 = vector.broadcast %cst_16 : f32 to vector<1x256xf32>
    %23 = arith.mulf %22, %21 : vector<1x256xf32>
    %24 = math.tanh %23 : vector<1x256xf32>
    %cst_17 = arith.constant 1.000000e+00 : f32
    %25 = vector.broadcast %cst_17 : f32 to vector<1x256xf32>
    %26 = arith.addf %24, %25 : vector<1x256xf32>
    %cst_18 = arith.constant 5.000000e-01 : f32
    %27 = vector.broadcast %cst_18 : f32 to vector<1x256xf32>
    %28 = arith.mulf %27, %26 : vector<1x256xf32>
    %29 = vector.broadcast %28 : vector<1x256xf32> to vector<4x256xf32>
    %30 = arith.mulf %3, %29 : vector<4x256xf32>
    %c0_19 = arith.constant 0 : index
    %c0_20 = arith.constant 0 : index
    %c0_21 = arith.constant 0 : index
    %31 = vector.load %arg8[%c0_19, %c0_20, %c0_21] : memref<1x4x256xf32, #tpu.memory_space<vmem>>, vector<1x4x256xf32>
    %32 = vector.shape_cast %31 : vector<1x4x256xf32> to vector<4x256xf32>
    %33 = vector.shape_cast %30 : vector<4x256xf32> to vector<1x4x256xf32>
    tpu.vector_store %arg8[%c0_19, %c0_20, %c0_21], %33 {strides = array<i32>} : memref<1x4x256xf32, #tpu.memory_space<vmem>>, vector<1x4x256xf32>,
    return
  }
  func.func @transform_0(%arg0: i32, %arg1: i32) -> (i32, i32, i32) {
    %c0_i32 = arith.constant 0 : i32
    %c0_i32_0 = arith.constant 0 : i32
    return %arg0, %c0_i32, %arg1 : i32, i32, i32
  }
  func.func @transform_1(%arg0: i32, %arg1: i32) -> (i32, i32, i32) {
    %c0_i32 = arith.constant 0 : i32
    %c0_i32_0 = arith.constant 0 : i32
    return %arg0, %c0_i32, %arg1 : i32, i32, i32
  }
  func.func @transform_2(%arg0: i32, %arg1: i32) -> (i32, i32) {
    %c0_i32 = arith.constant 0 : i32
    %c0_i32_0 = arith.constant 0 : i32
    %c0_i32_1 = arith.constant 0 : i32
    return %c0_i32, %c0_i32_0 : i32, i32
  }
  func.func @transform_3(%arg0: i32, %arg1: i32) -> (i32, i32) {
    %c0_i32 = arith.constant 0 : i32
    %c0_i32_0 = arith.constant 0 : i32
    %c0_i32_1 = arith.constant 0 : i32
    return %c0_i32, %c0_i32_0 : i32, i32
  }
  func.func @transform_4(%arg0: i32, %arg1: i32) -> (i32, i32) {
    %c0_i32 = arith.constant 0 : i32
    %c0_i32_0 = arith.constant 0 : i32
    %c0_i32_1 = arith.constant 0 : i32
    return %c0_i32, %c0_i32_0 : i32, i32
  }
  func.func @transform_5(%arg0: i32, %arg1: i32) -> i32 {
    %c0_i32 = arith.constant 0 : i32
    %c0_i32_0 = arith.constant 0 : i32
    return %c0_i32 : i32
  }
  func.func @transform_6(%arg0: i32, %arg1: i32) -> (i32, i32, i32) {
    %c0_i32 = arith.constant 0 : i32
    %c0_i32_0 = arith.constant 0 : i32
    return %arg0, %c0_i32, %arg1 : i32, i32, i32
  }
}

</mosaic_0001>

<llo_original>
// kernel: _attention3d_pallas.1
$region0: #{_attention3d_pallas.1}
  #allocation0 [shape = 'u32[]', space=smem, size = 0x4, offset = 0x4, fixed_abs, tag = 'smem constant byte address 0x4 - core index']
  #allocation1 [shape = 'u32[144,128]{1,0:T(1,128)}', space=vmem, size = 0x12000, scoped, tag = 'internal scratch']
  #allocation2 [shape = 'f32[1]{0:T(128)S(6)}', space=smem, size = 0x200, scoped, tag = 'scoped memory for _attention3d_pallas.1']
  %s0 = inlined_call_operand.vmem [shape: f32[2,8,256], index: 0, kind: input, shape index: {}]
  %s1 = inlined_call_operand.vmem [shape: f32[2,4,256], index: 1, kind: input, shape index: {}]
  %s2 = inlined_call_operand.vmem [shape: f32[16,8], index: 2, kind: input, shape index: {}]
  %s3 = inlined_call_operand.vmem [shape: f32[16,4], index: 3, kind: input, shape index: {}]
  %s4 = inlined_call_operand.vmem [shape: f32[16,2], index: 4, kind: input, shape index: {}]
  %s5 = inlined_call_operand.<no memory space> [shape: f32[1], index: 5, kind: input, shape index: {}]
  %s6 = inlined_call_operand.vmem [shape: f32[2,4,256], index: 6, kind: output, shape index: {}]
  %s7 = sld [smem:[#allocation0]]
  $region57: #{_attention3d_pallas.1} parent=0
    _
  %s9 = ssub.s32 1, %s7
  %s10 = scalar_select 0, %s9, %s7
  %11 = sst [smem:[#allocation2]] %s5
  loop: start=0, step=1, limit=4
  $region2: #{_attention3d_pallas.1} parent=0 // loop_pre_header
    _
  $region3: #{_attention3d_pallas.1} parent=0 // loop_header
    %s13 = sphi 0, %s17
    %p14 = scmp.ge.s32.totalorder %s13, 4
    %s20 = sphi 0, %s32
    %s21 = sphi 0, %s28
    %s22 = sphi 0, %s20
    %s23 = sphi 0, %s21
    %s24 = sphi 0, %s22
    %s25 = sphi 0, %s23
    %s37 = sphi 0, %s39
    %s40 = sphi 0, %s37
    %s41 = sphi 0, %s40
    %s57 = sphi 0, %s41
    %s65 = sphi 0, %s67
    %s68 = sphi 0, %s65
    %s69 = sphi 0, %s68
    %s85 = sphi 0, %s69
    %s89 = sphi 0, %s89
    %s91 = sphi 0, %s89
    %s92 = sphi 0, %s91
    %s106 = sphi 0, %s92
    %s110 = sphi 0, %s110
    %s112 = sphi 0, %s110
    %s113 = sphi 0, %s112
    %s127 = sphi 0, %s113
    %s131 = sphi 0, %s131
    %s133 = sphi 0, %s131
    %s134 = sphi 0, %s133
    %s148 = sphi 0, %s134
    %s152 = sphi 0, %s152
    %s154 = sphi 0, %s152
    %s155 = sphi 0, %s154
    %s169 = sphi 0, %s155
    %s177 = sphi 0, %s179
    %s180 = sphi 0, %s177
    %s181 = sphi 0, %s180
    %s197 = sphi 0, %s181
  $region4: #{_attention3d_pallas.1} parent=0 // loop_header_branch
    %16 = sbr.rel (%p14) target = $region8
  $region5: #{_attention3d_pallas.1} parent=0 // loop_body
    %s18 = ssub.s32 %s13, 1
    %s19 = ssub.s32 %s13, 2
    %s26 = sadd.s32 1, %s21
    %p27 = scmp.ge.s32.totalorder %s26, 1
    %s28 = scalar_select %p27, 0, %s26
    %s29 = sadd.s32 1, %s20
    %s30 = scalar_select %p27, %s29, %s20
    %p31 = scmp.ge.s32.totalorder %s30, 2
    %s32 = scalar_select %p31, 0, %s30
    %s33 = ssub.s32 %s20, %s32
    %s34 = ssub.s32 %s21, %s28
    %s35 = sor.u32 %s33, %s34
    %p36 = scmp.eq.s32.totalorder %s35, 0
    %s38 = sadd.s32 %s37, 1
    %s39 = scalar_select %p36, %s37, %s38
    %p42 = pneg %p36
    %p43 = scmp.eq.s32.totalorder %s13, 1
    %p44 = por %p42, %p43
    %p45 = scmp.ne.s32.totalorder %s37, %s40
    %p46 = scmp.eq.s32.totalorder %s13, 0
    %p47 = por %p45, %p46
    %p48 = scmp.ne.s32.totalorder %s37, %s40
    %p49 = scmp.eq.s32.totalorder %s18, 1
    %p50 = por %p48, %p49
    %p51 = scmp.ne.s32.totalorder %s40, %s41
    %p52 = scmp.eq.s32.totalorder %s18, 0
    %p53 = por %p51, %p52
    %p54 = scmp.ne.s32.totalorder %s40, %s41
    %p55 = scmp.eq.s32.totalorder %s19, 1
    %p56 = por %p54, %p55
    %p58 = scmp.ne.s32.totalorder %s41, %s57
    %p59 = scmp.eq.s32.totalorder %s19, 0
    %p60 = por %p58, %p59
    %s61 = ssub.s32 %s20, %s32
    %s62 = ssub.s32 %s21, %s28
    %s63 = sor.u32 %s61, %s62
    %p64 = scmp.eq.s32.totalorder %s63, 0
    %s66 = sadd.s32 %s65, 1
    %s67 = scalar_select %p64, %s65, %s66
    %p70 = pneg %p64
    %p71 = scmp.eq.s32.totalorder %s13, 1
    %p72 = por %p70, %p71
    %p73 = scmp.ne.s32.totalorder %s65, %s68
    %p74 = scmp.eq.s32.totalorder %s13, 0
    %p75 = por %p73, %p74
    %p76 = scmp.ne.s32.totalorder %s65, %s68
    %p77 = scmp.eq.s32.totalorder %s18, 1
    %p78 = por %p76, %p77
    %p79 = scmp.ne.s32.totalorder %s68, %s69
    %p80 = scmp.eq.s32.totalorder %s18, 0
    %p81 = por %p79, %p80
    %p82 = scmp.ne.s32.totalorder %s68, %s69
    %p83 = scmp.eq.s32.totalorder %s19, 1
    %p84 = por %p82, %p83
    %p86 = scmp.ne.s32.totalorder %s69, %s85
    %p87 = scmp.eq.s32.totalorder %s19, 0
    %p88 = por %p86, %p87
    %s90 = sadd.s32 %s89, 1
    %p93 = scmp.eq.s32.totalorder %s13, 1
    %p94 = scmp.ne.s32.totalorder %s89, %s91
    %p95 = scmp.eq.s32.totalorder %s13, 0
    %p96 = por %p94, %p95
    %p97 = scmp.ne.s32.totalorder %s89, %s91
    %p98 = scmp.eq.s32.totalorder %s18, 1
    %p99 = por %p97, %p98
    %p100 = scmp.ne.s32.totalorder %s91, %s92
    %p101 = scmp.eq.s32.totalorder %s18, 0
    %p102 = por %p100, %p101
    %p103 = scmp.ne.s32.totalorder %s91, %s92
    %p104 = scmp.eq.s32.totalorder %s19, 1
    %p105 = por %p103, %p104
    %p107 = scmp.ne.s32.totalorder %s92, %s106
    %p108 = scmp.eq.s32.totalorder %s19, 0
    %p109 = por %p107, %p108
    %s111 = sadd.s32 %s110, 1
    %p114 = scmp.eq.s32.totalorder %s13, 1
    %p115 = scmp.ne.s32.totalorder %s110, %s112
    %p116 = scmp.eq.s32.totalorder %s13, 0
    %p117 = por %p115, %p116
    %p118 = scmp.ne.s32.totalorder %s110, %s112
    %p119 = scmp.eq.s32.totalorder %s18, 1
    %p120 = por %p118, %p119
    %p121 = scmp.ne.s32.totalorder %s112, %s113
    %p122 = scmp.eq.s32.totalorder %s18, 0
    %p123 = por %p121, %p122
    %p124 = scmp.ne.s32.totalorder %s112, %s113
    %p125 = scmp.eq.s32.totalorder %s19, 1
    %p126 = por %p124, %p125
    %p128 = scmp.ne.s32.totalorder %s113, %s127
    %p129 = scmp.eq.s32.totalorder %s19, 0
    %p130 = por %p128, %p129
    %s132 = sadd.s32 %s131, 1
    %p135 = scmp.eq.s32.totalorder %s13, 1
    %p136 = scmp.ne.s32.totalorder %s131, %s133
    %p137 = scmp.eq.s32.totalorder %s13, 0
    %p138 = por %p136, %p137
    %p139 = scmp.ne.s32.totalorder %s131, %s133
    %p140 = scmp.eq.s32.totalorder %s18, 1
    %p141 = por %p139, %p140
    %p142 = scmp.ne.s32.totalorder %s133, %s134
    %p143 = scmp.eq.s32.totalorder %s18, 0
    %p144 = por %p142, %p143
    %p145 = scmp.ne.s32.totalorder %s133, %s134
    %p146 = scmp.eq.s32.totalorder %s19, 1
    %p147 = por %p145, %p146
    %p149 = scmp.ne.s32.totalorder %s134, %s148
    %p150 = scmp.eq.s32.totalorder %s19, 0
    %p151 = por %p149, %p150
    %s153 = sadd.s32 %s152, 1
    %p156 = scmp.eq.s32.totalorder %s13, 1
    %p157 = scmp.ne.s32.totalorder %s152, %s154
    %p158 = scmp.eq.s32.totalorder %s13, 0
    %p159 = por %p157, %p158
    %p160 = scmp.ne.s32.totalorder %s152, %s154
    %p161 = scmp.eq.s32.totalorder %s18, 1
    %p162 = por %p160, %p161
    %p163 = scmp.ne.s32.totalorder %s154, %s155
    %p164 = scmp.eq.s32.totalorder %s18, 0
    %p165 = por %p163, %p164
    %p166 = scmp.ne.s32.totalorder %s154, %s155
    %p167 = scmp.eq.s32.totalorder %s19, 1
    %p168 = por %p166, %p167
    %p170 = scmp.ne.s32.totalorder %s155, %s169
    %p171 = scmp.eq.s32.totalorder %s19, 0
    %p172 = por %p170, %p171
    %s173 = ssub.s32 %s20, %s32
    %s174 = ssub.s32 %s21, %s28
    %s175 = sor.u32 %s173, %s174
    %p176 = scmp.eq.s32.totalorder %s175, 0
    %s178 = sadd.s32 %s177, 1
    %s179 = scalar_select %p176, %s177, %s178
    %p182 = pneg %p176
    %p183 = scmp.eq.s32.totalorder %s13, 1
    %p184 = por %p182, %p183
    %p185 = scmp.ne.s32.totalorder %s177, %s180
    %p186 = scmp.eq.s32.totalorder %s13, 0
    %p187 = por %p185, %p186
    %p188 = scmp.ne.s32.totalorder %s177, %s180
    %p189 = scmp.eq.s32.totalorder %s18, 1
    %p190 = por %p188, %p189
    %p191 = scmp.ne.s32.totalorder %s180, %s181
    %p192 = scmp.eq.s32.totalorder %s18, 0
    %p193 = por %p191, %p192
    %p194 = scmp.ne.s32.totalorder %s180, %s181
    %p195 = scmp.eq.s32.totalorder %s19, 1
    %p196 = por %p194, %p195
    %p198 = scmp.ne.s32.totalorder %s181, %s197
    %p199 = scmp.eq.s32.totalorder %s19, 0
    %p200 = por %p198, %p199
    %p201 = scmp.le.s32.totalorder 1, %s13
    %p202 = scmp.lt.s32.totalorder %s13, 3
    %p203 = pnand %p201, %p202
    %p204 = pneg %p203
    // Predicated region
    $region9: #{_attention3d_pallas.1} parent=5 // pred_check
      _
    $region10: #{_attention3d_pallas.1} parent=5 // pred_check_branch
      %206 = sbr.rel (%p203) target = $region12
    $region11: #{_attention3d_pallas.1} parent=5 // pred_region
      %s207 = ssub.s32 %s13, 1
      // Predicated region
      $region13: #{_attention3d_pallas.1} parent=11 // pred_check
        %p208 = pneg %p102
      $region14: #{_attention3d_pallas.1} parent=11 // pred_check_branch
        %210 = sbr.rel (%p208) target = $region16
      $region15: #{_attention3d_pallas.1} parent=11 // pred_region
        _
      $region16: #{_attention3d_pallas.1} parent=11 // pred_fallthru
        _
      // Predicated region
      $region17: #{_attention3d_pallas.1} parent=11 // pred_check
        %p211 = pneg %p123
      $region18: #{_attention3d_pallas.1} parent=11 // pred_check_branch
        %213 = sbr.rel (%p211) target = $region20
      $region19: #{_attention3d_pallas.1} parent=11 // pred_region
        _
      $region20: #{_attention3d_pallas.1} parent=11 // pred_fallthru
        _
      // Predicated region
      $region21: #{_attention3d_pallas.1} parent=11 // pred_check
        %p214 = pneg %p144
      $region22: #{_attention3d_pallas.1} parent=11 // pred_check_branch
        %216 = sbr.rel (%p214) target = $region24
      $region23: #{_attention3d_pallas.1} parent=11 // pred_region
        _
      $region24: #{_attention3d_pallas.1} parent=11 // pred_fallthru
        _
      // Predicated region
      $region25: #{_attention3d_pallas.1} parent=11 // pred_check
        %p217 = pneg %p165
      $region26: #{_attention3d_pallas.1} parent=11 // pred_check_branch
        %219 = sbr.rel (%p217) target = $region28
      $region27: #{_attention3d_pallas.1} parent=11 // pred_region
        _
      $region28: #{_attention3d_pallas.1} parent=11 // pred_fallthru
        _
    $region12: #{_attention3d_pallas.1} parent=5 // pred_fallthru
      _
    %p220 = scmp.lt.s32.totalorder %s13, 2
    // Predicated region
    $region29: #{_attention3d_pallas.1} parent=5 // pred_check
      %p221 = pneg %p220
    $region30: #{_attention3d_pallas.1} parent=5 // pred_check_branch
      %223 = sbr.rel (%p221) target = $region32
    $region31: #{_attention3d_pallas.1} parent=5 // pred_region
      // Predicated region
      $region33: #{_attention3d_pallas.1} parent=31 // pred_check
        %p224 = pneg %p47
      $region34: #{_attention3d_pallas.1} parent=31 // pred_check_branch
        %226 = sbr.rel (%p224) target = $region36
      $region35: #{_attention3d_pallas.1} parent=31 // pred_region
        %s227 = smul.u32 2, %s21
        %p228 = scmp.lt.s32.totalorder %s20, 1
        %s229 = scalar_select %p228, %s20, 1
        %p230 = scmp.lt.s32.totalorder %s227, 1
        %s231 = scalar_select %p230, %s227, 1
        %s232 = smul.addr %s229, 2
        %s233 = sadd.s32 %s231, %s232
        %s234 = smul.addr %s233, 8
        %s235 = scalar_lea.vmem %s0, %s234
        %s236 = smul.u32 2, %s21
      $region36: #{_attention3d_pallas.1} parent=31 // pred_fallthru
        _
      // Predicated region
      $region37: #{_attention3d_pallas.1} parent=31 // pred_check
        %p237 = pneg %p75
      $region38: #{_attention3d_pallas.1} parent=31 // pred_check_branch
        %239 = sbr.rel (%p237) target = $region40
      $region39: #{_attention3d_pallas.1} parent=31 // pred_region
        %s240 = smul.u32 2, %s21
        %p241 = scmp.lt.s32.totalorder %s20, 1
        %s242 = scalar_select %p241, %s20, 1
        %p243 = scmp.lt.s32.totalorder %s240, 1
        %s244 = scalar_select %p243, %s240, 1
        %s245 = smul.addr %s242, 2
        %s246 = sadd.s32 %s244, %s245
        %s247 = smul.addr %s246, 4
        %s248 = scalar_lea.vmem %s1, %s247
        %s249 = smul.u32 2, %s21
      $region40: #{_attention3d_pallas.1} parent=31 // pred_fallthru
        _
    $region32: #{_attention3d_pallas.1} parent=5 // pred_fallthru
      _
    %p250 = scmp.le.s32.totalorder 1, %s13
    %p251 = scmp.lt.s32.totalorder %s13, 3
    %p252 = pnand %p250, %p251
    %p253 = pneg %p252
    // Predicated region
    $region41: #{_attention3d_pallas.1} parent=5 // pred_check
      _
    $region42: #{_attention3d_pallas.1} parent=5 // pred_check_branch
      %255 = sbr.rel (%p252) target = $region44
    $region43: #{_attention3d_pallas.1} parent=5 // pred_region
      %s256 = ssub.s32 %s13, 1
      %s257 = smul.u32 2, %s23
      %p258 = scmp.lt.s32.totalorder %s22, 1
      %s259 = scalar_select %p258, %s22, 1
      %p260 = scmp.lt.s32.totalorder %s257, 1
      %s261 = scalar_select %p260, %s257, 1
      %s262 = smul.addr %s259, 2
      %s263 = sadd.s32 %s261, %s262
      %s264 = smul.addr %s263, 8
      %s265 = scalar_lea.vmem %s0, %s264
      %p266 = pneg %p53
      %p267 = pneg %p50
      %s268 = smul.u32 2, %s23
      %p269 = scmp.lt.s32.totalorder %s22, 1
      %s270 = scalar_select %p269, %s22, 1
      %p271 = scmp.lt.s32.totalorder %s268, 1
      %s272 = scalar_select %p271, %s268, 1
      %s273 = smul.addr %s270, 2
      %s274 = sadd.s32 %s272, %s273
      %s275 = smul.addr %s274, 4
      %s276 = scalar_lea.vmem %s1, %s275
      %p277 = pneg %p81
      %p278 = pneg %p78
      %p279 = pneg %p102
      %p280 = pneg %p99
      %p281 = pneg %p123
      %p282 = pneg %p120
      %p283 = pneg %p144
      %p284 = pneg %p141
      %p285 = pneg %p165
      %p286 = pneg %p162
      %p287 = pneg %p193
      %p288 = pneg %p190
      %s289 = smul.u32 2, %s23
      %p290 = scmp.lt.s32.totalorder %s22, 1
      %s291 = scalar_select %p290, %s22, 1
      %p292 = scmp.lt.s32.totalorder %s289, 1
      %s293 = scalar_select %p292, %s289, 1
      %s294 = smul.addr %s291, 2
      %s295 = sadd.s32 %s293, %s294
      %s296 = smul.addr %s295, 4
      %s297 = scalar_lea.vmem %s6, %s296
      %s298 = smul.u32 2, %s23
      %p299 = scmp.lt.s32.totalorder %s22, 1
      %s300 = scalar_select %p299, %s22, 1
      %p301 = scmp.lt.s32.totalorder %s298, 1
      %s302 = scalar_select %p301, %s298, 1
      %s303 = smul.addr %s300, 2
      %s304 = sadd.s32 %s302, %s303
      %s305 = smul.addr %s304, 8
      %s306 = scalar_lea.vmem %s0, %s305
      %s307 = smul.u32 2, %s23
      %s308 = smul.u32 2, %s23
      %p309 = scmp.lt.s32.totalorder %s22, 1
      %s310 = scalar_select %p309, %s22, 1
      %p311 = scmp.lt.s32.totalorder %s308, 1
      %s312 = scalar_select %p311, %s308, 1
      %s313 = smul.addr %s310, 2
      %s314 = sadd.s32 %s312, %s313
      %s315 = smul.addr %s314, 4
      %s316 = scalar_lea.vmem %s1, %s315
      %s317 = smul.u32 2, %s23
      %s318 = smul.u32 2, %s23
      %p319 = scmp.lt.s32.totalorder %s22, 1
      %s320 = scalar_select %p319, %s22, 1
      %p321 = scmp.lt.s32.totalorder %s318, 1
      %s322 = scalar_select %p321, %s318, 1
      %s323 = smul.addr %s320, 2
      %s324 = sadd.s32 %s322, %s323
      %s325 = smul.addr %s324, 4
      %s326 = scalar_lea.vmem %s6, %s325
      %s327 = smul.u32 2, %s23
      %v328 = vld [vmem:[%s306] sm:$0xff]
      %v329 = vld [vmem:[%s306 + $0x8] sm:$0xff]
      %v330 = vld [vmem:[%s316] sm:$0xff]
      %v331 = vld [vmem:[%s4] sm:$0xff]
      %v332 = vld [vmem:[%s4 + $0x8] sm:$0xff]
      %v333 = vld [vmem:[%s2] sm:$0xff]
      %v334 = vld [vmem:[%s2 + $0x8] sm:$0xff]
      %v335 = vld [vmem:[%s3] sm:$0xff]
      %v336 = vld [vmem:[%s3 + $0x8] sm:$0xff]
      %v338 = vcombine.high %v330, %v330
      %vm339 = vcmask 31744
      %v341 = vsel %vm339, %v335, 0
      %v344 = vsel %vm339, %v336, 0
      %vm346 = vcmask 1043456
      %v347 = vsel %vm346, %v330, 0
      %v349 = vsel %vm346, %v338, 0
      %351 = vmatprep.subr.mxu0 0.0
      %352 = vmatpush1.msra.mxu0 0.0
      %353 = vmatprep.subr.mxu0 0.0
      %354 = vmatpush1.msra.mxu0 0.0
      %355 = vmatprep.subr.mxu0 0.0
      %356 = vmatpush1.msra.mxu0 0.0
      %357 = vmatprep.subr.mxu0 0.0
      %358 = vmatpush1.msra.mxu0 0.0
      %359 = vmatprep.subr.mxu0 0.0
      %360 = vmatpush1.msra.mxu0 0.0
      %361 = vmatprep.subr.mxu0 0.0
      %362 = vmatpush1.msra.mxu0 0.0
      %363 = vmatprep.subr.mxu0 0.0
      %364 = vmatpush1.msra.mxu0 0.0
      %365 = vmatprep.subr.mxu0 0.0
      %366 = vmatpush1.msra.mxu0 0.0
      %367 = vmatprep.subr.mxu0 0.0
      %368 = vmatpush1.msra.mxu0 0.0
      %369 = vmatprep.subr.mxu0 0.0
      %370 = vmatpush1.msra.mxu0 0.0
      %371 = vmatprep.subr.mxu0 0.0
      %372 = vmatpush1.msra.mxu0 0.0
      %373 = vmatprep.subr.mxu0 0.0
      %374 = vmatpush1.msra.mxu0 0.0
      %375 = vmatprep.subr.mxu0 0.0
      %376 = vmatpush1.msra.mxu0 0.0
      %377 = vmatprep.subr.mxu0 0.0
      %378 = vmatpush1.msra.mxu0 0.0
      %379 = vmatprep.subr.mxu0 0.0
      %380 = vmatpush1.msra.mxu0 0.0
      %381 = vmatprep.subr.mxu0 %v349
      %382 = vmatpush1.msra.mxu0 %v347
      %383 = vmatprep.subr.mxu0 0.0
      %384 = vmatpush2.msra.mxu0 0.0
      %385 = vmatprep.subr.mxu0 0.0
      %386 = vmatpush2.msra.mxu0 0.0
      %387 = vmatprep.subr.mxu0 0.0
      %388 = vmatpush2.msra.mxu0 0.0
      %389 = vmatprep.subr.mxu0 0.0
      %390 = vmatpush2.msra.mxu0 0.0
      %391 = vmatprep.subr.mxu0 0.0
      %392 = vmatpush2.msra.mxu0 0.0
      %393 = vmatprep.subr.mxu0 0.0
      %394 = vmatpush2.msra.mxu0 0.0
      %395 = vmatprep.subr.mxu0 0.0
      %396 = vmatpush2.msra.mxu0 0.0
      %397 = vmatprep.subr.mxu0 0.0
      %398 = vmatpush2.msra.mxu0 0.0
      %399 = vmatprep.subr.mxu0 0.0
      %400 = vmatpush2.msra.mxu0 0.0
      %401 = vmatprep.subr.mxu0 0.0
      %402 = vmatpush2.msra.mxu0 0.0
      %403 = vmatprep.subr.mxu0 0.0
      %404 = vmatpush2.msra.mxu0 0.0
      %405 = vmatprep.subr.mxu0 0.0
      %406 = vmatpush2.msra.mxu0 0.0
      %407 = vmatprep.subr.mxu0 0.0
      %408 = vmatpush2.msra.mxu0 0.0
      %409 = vmatprep.subr.mxu0 0.0
      %410 = vmatpush2.msra.mxu0 0.0
      %411 = vmatprep.subr.mxu0 0.0
      %412 = vmatpush2.msra.mxu0 0.0
      %413 = vmatprep.subr.mxu0 0.0
      %414 = vmatpush2.msra.mxu0 0.0
      %415 = vmatprep.mubr.f32.mxu0 0.0
      %416 = vmatmul.mubr.f32.gmra.mxu0 %v341
      %v417 = vpop.f32.mrf.mxu0
      %v418 = vadd.f32 0.0, %v417
      %v419 = vpop.f32.mrf.mxu0
      %v420 = vadd.f32 0.0, %v419
      %421 = vmatprep.mubr.f32.mxu0 0.0
      %422 = vmatmul.mubr.f32.gmra.mxu0 %v344
      %v423 = vpop.f32.mrf.mxu0
      %v424 = vadd.f32 0.0, %v423
      %v425 = vpop.f32.mrf.mxu0
      %v426 = vadd.f32 0.0, %v425
      %427 = vdwg.mxu0
      %vm428 = vcmask 64512
      %v430 = vsel %vm428, %v333, 0
      %v433 = vsel %vm428, %v334, 0
      %435 = vmatprep.subr.mxu0 0.0
      %436 = vmatpush1.msra.mxu0 0.0
      %437 = vmatprep.subr.mxu0 0.0
      %438 = vmatpush1.msra.mxu0 0.0
      %439 = vmatprep.subr.mxu0 0.0
      %440 = vmatpush1.msra.mxu0 0.0
      %441 = vmatprep.subr.mxu0 0.0
      %442 = vmatpush1.msra.mxu0 0.0
      %443 = vmatprep.subr.mxu0 0.0
      %444 = vmatpush1.msra.mxu0 0.0
      %445 = vmatprep.subr.mxu0 0.0
      %446 = vmatpush1.msra.mxu0 0.0
      %447 = vmatprep.subr.mxu0 0.0
      %448 = vmatpush1.msra.mxu0 0.0
      %449 = vmatprep.subr.mxu0 0.0
      %450 = vmatpush1.msra.mxu0 0.0
      %451 = vmatprep.subr.mxu0 0.0
      %452 = vmatpush1.msra.mxu0 0.0
      %453 = vmatprep.subr.mxu0 0.0
      %454 = vmatpush1.msra.mxu0 0.0
      %455 = vmatprep.subr.mxu0 0.0
      %456 = vmatpush1.msra.mxu0 0.0
      %457 = vmatprep.subr.mxu0 0.0
      %458 = vmatpush1.msra.mxu0 0.0
      %459 = vmatprep.subr.mxu0 0.0
      %460 = vmatpush1.msra.mxu0 0.0
      %461 = vmatprep.subr.mxu0 0.0
      %462 = vmatpush1.msra.mxu0 0.0
      %463 = vmatprep.subr.mxu0 0.0
      %464 = vmatpush1.msra.mxu0 0.0
      %465 = vmatprep.subr.mxu0 %v329
      %466 = vmatpush1.msra.mxu0 %v328
      %467 = vmatprep.subr.mxu0 0.0
      %468 = vmatpush2.msra.mxu0 0.0
      %469 = vmatprep.subr.mxu0 0.0
      %470 = vmatpush2.msra.mxu0 0.0
      %471 = vmatprep.subr.mxu0 0.0
      %472 = vmatpush2.msra.mxu0 0.0
      %473 = vmatprep.subr.mxu0 0.0
      %474 = vmatpush2.msra.mxu0 0.0
      %475 = vmatprep.subr.mxu0 0.0
      %476 = vmatpush2.msra.mxu0 0.0
      %477 = vmatprep.subr.mxu0 0.0
      %478 = vmatpush2.msra.mxu0 0.0
      %479 = vmatprep.subr.mxu0 0.0
      %480 = vmatpush2.msra.mxu0 0.0
      %481 = vmatprep.subr.mxu0 0.0
      %482 = vmatpush2.msra.mxu0 0.0
      %483 = vmatprep.subr.mxu0 0.0
      %484 = vmatpush2.msra.mxu0 0.0
      %485 = vmatprep.subr.mxu0 0.0
      %486 = vmatpush2.msra.mxu0 0.0
      %487 = vmatprep.subr.mxu0 0.0
      %488 = vmatpush2.msra.mxu0 0.0
      %489 = vmatprep.subr.mxu0 0.0
      %490 = vmatpush2.msra.mxu0 0.0
      %491 = vmatprep.subr.mxu0 0.0
      %492 = vmatpush2.msra.mxu0 0.0
      %493 = vmatprep.subr.mxu0 0.0
      %494 = vmatpush2.msra.mxu0 0.0
      %495 = vmatprep.subr.mxu0 0.0
      %496 = vmatpush2.msra.mxu0 0.0
      %497 = vmatprep.subr.mxu0 0.0
      %498 = vmatpush2.msra.mxu0 0.0
      %499 = vmatprep.mubr.f32.mxu0 0.0
      %500 = vmatmul.mubr.f32.gmra.mxu0 %v430
      %v501 = vpop.f32.mrf.mxu0
      %v502 = vadd.f32 %v418, %v501
      %v503 = vpop.f32.mrf.mxu0
      %v504 = vadd.f32 %v420, %v503
      %505 = vmatprep.mubr.f32.mxu0 0.0
      %506 = vmatmul.mubr.f32.gmra.mxu0 %v433
      %v507 = vpop.f32.mrf.mxu0
      %v508 = vadd.f32 %v424, %v507
      %v509 = vpop.f32.mrf.mxu0
      %v510 = vadd.f32 %v426, %v509
      %511 = vdwg.mxu0
      %513 = vset.pattern.permute.xlu0 0
      %514 = vperm.xlu0 %513, %v331
      %v515 = vpop.permute.xlu0 %514
      %518 = vset.pattern.permute.xlu0 0
      %519 = vperm.xlu0 %518, %v332
      %v520 = vpop.permute.xlu0 %519
      %v522 = vadd.f32 %v502, %v515
      %v523 = vadd.f32 %v504, %v515
      %v524 = vadd.f32 %v508, %v520
      %v525 = vadd.f32 %v510, %v520
      %v526 = vmax.f32 %v522, 0.0
      %v527 = vmax.f32 %v523, 0.0
      %v528 = vmax.f32 %v524, 0.0
      %v529 = vmax.f32 %v525, 0.0
      %530 = vset.pattern.permute.xlu0 1
      %531 = vperm.xlu0 %530, %v331
      %v532 = vpop.permute.xlu0 %531
      %534 = vset.pattern.permute.xlu0 1
      %535 = vperm.xlu0 %534, %v332
      %v536 = vpop.permute.xlu0 %535
      %v538 = vmul.f32 %v526, %v532
      %v539 = vmul.f32 %v527, %v532
      %v540 = vmul.f32 %v528, %v536
      %v541 = vmul.f32 %v529, %v536
      %v542 = vadd.f32 %v538, %v540
      %v543 = vrot.slane %v542, 4
      %v544 = vadd.f32 %v542, %v543
      %v545 = vrot.slane %v544, 2
      %v546 = vadd.f32 %v544, %v545
      %v547 = vrot.slane %v546, 1
      %v548 = vadd.f32 %v546, %v547
      %v549 = vadd.f32 %v539, %v541
      %v550 = vrot.slane %v549, 4
      %v551 = vadd.f32 %v549, %v550
      %v552 = vrot.slane %v551, 2
      %v553 = vadd.f32 %v551, %v552
      %v554 = vrot.slane %v553, 1
      %v555 = vadd.f32 %v553, %v554
      %s556 = sld [smem:[#allocation2]]
      %v557 = vstv %s556
      %v558 = vadd.f32 %v548, %v557
      %v559 = vadd.f32 %v555, %v557
      %v560 = vmul.f32 %v558, 0.5
      %v561 = vmul.f32 %v559, 0.5
      %v562 = vtanh.pop %v560
      %v563 = vtanh.pop %v561
      %v564 = vadd.f32 %v562, 1.0
      %v565 = vadd.f32 %v563, 1.0
      %v566 = vmul.f32 %v564, 0.5
      %v567 = vmul.f32 %v565, 0.5
      %v570 = vcombine.low %v566, %v567
      %v572 = vmul.f32 %v330, %v570
      %573 = vst [vmem:[%s326] sm:$0xff] %v572
      %s574 = smul.u32 2, %s23
      %p575 = scmp.lt.s32.totalorder %s22, 1
      %s576 = scalar_select %p575, %s22, 1
      %p577 = scmp.lt.s32.totalorder %s574, 1
      %s578 = scalar_select %p577, %s574, 1
      %s579 = smul.addr %s576, 2
      %s580 = sadd.s32 %s578, %s579
      %s581 = smul.addr %s580, 4
      %s582 = scalar_lea.vmem %s6, %s581
      // Predicated region
      $region45: #{_attention3d_pallas.1} parent=43 // pred_check
        %p583 = pneg %p190
      $region46: #{_attention3d_pallas.1} parent=43 // pred_check_branch
        %585 = sbr.rel (%p583) target = $region48
      $region47: #{_attention3d_pallas.1} parent=43 // pred_region
        %s586 = smul.u32 2, %s23
      $region48: #{_attention3d_pallas.1} parent=43 // pred_fallthru
        _
    $region44: #{_attention3d_pallas.1} parent=5 // pred_fallthru
      _
    %p587 = scmp.le.s32.totalorder 2, %s13
    // Predicated region
    $region49: #{_attention3d_pallas.1} parent=5 // pred_check
      %p588 = pneg %p587
    $region50: #{_attention3d_pallas.1} parent=5 // pred_check_branch
      %590 = sbr.rel (%p588) target = $region52
    $region51: #{_attention3d_pallas.1} parent=5 // pred_region
      %s591 = ssub.s32 %s13, 2
      // Predicated region
      $region53: #{_attention3d_pallas.1} parent=51 // pred_check
        %p592 = pneg %p196
      $region54: #{_attention3d_pallas.1} parent=51 // pred_check_branch
        %594 = sbr.rel (%p592) target = $region56
      $region55: #{_attention3d_pallas.1} parent=51 // pred_region
        %s595 = smul.u32 2, %s25
        %p596 = scmp.lt.s32.totalorder %s24, 1
        %s597 = scalar_select %p596, %s24, 1
        %p598 = scmp.lt.s32.totalorder %s595, 1
        %s599 = scalar_select %p598, %s595, 1
        %s600 = smul.addr %s597, 2
        %s601 = sadd.s32 %s599, %s600
        %s602 = smul.addr %s601, 4
        %s603 = scalar_lea.vmem %s6, %s602
      $region56: #{_attention3d_pallas.1} parent=51 // pred_fallthru
        _
    $region52: #{_attention3d_pallas.1} parent=5 // pred_fallthru
      _
  $region6: #{_attention3d_pallas.1} parent=0 // loop_footer
    %s17 = sadd.s32 1, %s13
  $region7: #{_attention3d_pallas.1} parent=0 // loop_footer_branch
    %12 = sbr.rel target = $region3
  $region8: #{_attention3d_pallas.1} parent=0 // loop_exit
    _

</llo_original>
